<compile_context>
chip_gen: v5e
topology: v5e:2x2
jax: 0.10.0
libtpu: 0.0.40
codegen_flags: <defaults>
</compile_context>

<pallas_src>
import math

import jax
import jax.numpy as jnp
from jax.experimental import pallas as pl
from jax.experimental.pallas import tpu as pltpu


_LANE = 128
# ~2 MiB per input block: big enough to amortize the per-step overhead on
# v6e/v7x, small enough that in+out double-buffered (~8 MiB) fits v5e's 16 MiB
# scoped-VMEM default without touching vmem_limit_bytes.
_TARGET_BLOCK_BYTES = 2 << 20


def _scale_kernel(scale_ref, x_ref, o_ref):
    # scale_ref: SMEM (N,) f32 per-sample scale (0.0 dropped, 1/keep_prob kept)
    # x_ref / o_ref: (1, TR, L) VMEM tile of sample n's flattened features
    n = pl.program_id(0)
    s = scale_ref[n].astype(x_ref.dtype)
    o_ref[...] = x_ref[...] * s


def _scale_add_kernel(scale_ref, x_ref, res_ref, o_ref):
    # Fused ConvNeXt-style residual: out = residual + x * scale[n]
    n = pl.program_id(0)
    s = scale_ref[n].astype(x_ref.dtype)
    o_ref[...] = res_ref[...] + x_ref[...] * s


def _feature_split(F, dtype):
    """View per-sample features (F elems) as (R, L); pick row tile TR.

    Guarantees L % 128 == 0 (lane-dense, unmasked vst) and TR a multiple of the
    dtype's sublane pack factor (8 f32 / 16 bf16 / 32 int8-fp8) unless TR == R
    (full-dim escape hatch).  Returns None when F % 128 != 0: those shapes go
    to plain XLA instead of a masked-store kernel.
    """
    if F % _LANE != 0:
        return None
    itemsize = jnp.dtype(dtype).itemsize
    pack = max(8, 32 // itemsize)  # rows per fully-packed vreg sublane group
    L = _LANE
    for cand in (2048, 1024, 512, 256):
        if F % cand == 0:
            L = cand
            break
    R = F // L
    target_rows = _TARGET_BLOCK_BYTES // (L * itemsize)
    target_rows = max(pack, (target_rows // pack) * pack)
    TR = R if R <= target_rows else target_rows  # TR == R is legal even if R % pack != 0
    return R, L, TR


def _apply_per_sample_scale(x, scale, residual=None, donate_x=False):
    """out[n, ...] = (residual[n, ...] +) x[n, ...] * scale[n]."""
    orig_shape = x.shape
    N = orig_shape[0]
    F = math.prod(orig_shape[1:]) if x.ndim > 1 else 1
    split = _feature_split(F, x.dtype)

    if split is None:
        # Odd feature counts: a lane-misaligned kernel would emit masked
        # vst.msk partial stores; plain XLA broadcast-multiply reaches the HBM
        # roofline for these shapes and fuses with neighbors.
        bshape = (N,) + (1,) * (x.ndim - 1)
        s = scale.reshape(bshape).astype(x.dtype)
        return x * s if residual is None else residual + x * s

    R, L, TR = split
    xv = x.reshape(N, R, L)
    grid = (N, pl.cdiv(R, TR))  # ragged last row-block handled by Pallas
    block = pl.BlockSpec((1, TR, L), lambda n, t: (n, t, 0))

    in_specs = [pl.BlockSpec(memory_space=pltpu.MemorySpace.SMEM), block]
    operands = [scale.astype(jnp.float32), xv]
    kernel = _scale_kernel
    if residual is not None:
        in_specs.append(block)
        operands.append(residual.reshape(N, R, L))
        kernel = _scale_add_kernel

    out = pl.pallas_call(
        kernel,
        out_shape=jax.ShapeDtypeStruct(xv.shape, x.dtype),
        grid=grid,
        in_specs=in_specs,
        out_specs=block,
        input_output_aliases={1: 0} if donate_x else {},
        compiler_params=pltpu.CompilerParams(
            # Pure elementwise map: both axes independent, so megacore (v7x's
            # two TCs) can shard either axis even when N is small.
            dimension_semantics=("parallel", "parallel")),
    )(*operands)
    return out.reshape(orig_shape)


def _per_sample_scale(x, key, drop_prob, scale_by_keep):
    keep_prob = 1.0 - drop_prob
    mask = jax.random.bernoulli(key, p=keep_prob, shape=(x.shape[0],)).astype(jnp.float32)
    return mask / keep_prob if (keep_prob > 0.0 and scale_by_keep) else mask


def drop_path(x, key, drop_prob=0.0, training=False, scale_by_keep=True, donate_x=False):
    """Pallas-backed DropPath forward (stochastic depth, per sample)."""
    if drop_prob == 0.0 or not training:
        return x  # fast path: identity, no kernel launch
    scale = _per_sample_scale(x, key, drop_prob, scale_by_keep)
    return _apply_per_sample_scale(x, scale, donate_x=donate_x)


def drop_path_add(residual, x, key, drop_prob=0.0, training=False,
                  scale_by_keep=True, donate_x=False):
    """Fused `residual + drop_path(x)` — saves one full activation read+write."""
    if drop_prob == 0.0 or not training:
        return residual + x
    scale = _per_sample_scale(x, key, drop_prob, scale_by_keep)
    return _apply_per_sample_scale(x, scale, residual=residual, donate_x=donate_x)


def drop_path_ref(x, scale):
    """Pure-JAX reference: x * per-sample scale broadcast (matches torch impl)."""
    bshape = (x.shape[0],) + (1,) * (x.ndim - 1)
    return x * scale.reshape(bshape).astype(x.dtype)


if __name__ == "__main__":
    key = jax.random.PRNGKey(0)
    kx, kres, kmask = jax.random.split(key, 3)

    # Small NHWC feature map, as DropPath sees inside a ConvNeXt-V2 block.
    N, H, W, C = 2, 16, 16, 4
    x = jax.random.normal(kx, (N, H, W, C), dtype=jnp.float32)
    res = jax.random.normal(kres, (N, H, W, C), dtype=jnp.float32)

    drop_prob = 0.25
    keep_prob = 1.0 - drop_prob

    # Eval mode / drop_prob == 0 -> identity fast path (no kernel).
    assert drop_path(x, kmask, drop_prob=drop_prob, training=False) is x
    assert drop_path(x, kmask, drop_prob=0.0, training=True) is x

    # Deterministic mask from kmask (same draw the kernel wrapper makes).
    mask = jax.random.bernoulli(kmask, p=keep_prob, shape=(N,)).astype(jnp.float32)
    scale = mask / keep_prob
    ref = drop_path_ref(x, scale)

    # Training mode exercises the Pallas kernel.
    y = jax.block_until_ready(drop_path(x, kmask, drop_prob=drop_prob, training=True))
    assert y.shape == x.shape
    assert jnp.allclose(y, ref, atol=1e-6, rtol=1e-6), "mismatch vs reference"

    # Fused residual + drop_path (ConvNeXt-style `input + drop_path(block(x))`).
    y_add = jax.block_until_ready(
        drop_path_add(res, x, kmask, drop_prob=drop_prob, training=True))
    assert jnp.allclose(y_add, res + ref, atol=1e-6, rtol=1e-6), "fused add mismatch"

    # bf16 exercises the dtype-aware (16,128) sublane-packed tiling.
    xb = x.astype(jnp.bfloat16)
    yb = jax.block_until_ready(drop_path(xb, kmask, drop_prob=drop_prob, training=True))
    refb = drop_path_ref(xb, scale)
    assert jnp.allclose(yb.astype(jnp.float32), refb.astype(jnp.float32),
                        atol=1e-2, rtol=1e-2), "bf16 mismatch"

    # F not a multiple of 128 -> pure-XLA fallback path (no masked-store kernel).
    x_odd = jax.random.normal(kx, (2, 3, 5, 7), dtype=jnp.float32)
    y_odd = jax.block_until_ready(
        drop_path(x_odd, kmask, drop_prob=drop_prob, training=True))
    assert jnp.allclose(y_odd, drop_path_ref(x_odd, scale), atol=1e-6, rtol=1e-6)

    print("KERNEL_OK")
</pallas_src>

<mosaic_0001>
module attributes {stable_mosaic.version = 11 : i64} {
  func.func @_scale_kernel(%arg0: i32, %arg1: i32, %arg2: memref<2xf32, #tpu.memory_space<smem>>, %arg3: memref<1x1x1024xf32, #tpu.memory_space<vmem>>, %arg4: memref<1x1x1024xf32, #tpu.memory_space<vmem>>) attributes {dimension_semantics = [#tpu.dimension_semantics<parallel>, #tpu.dimension_semantics<parallel>], iteration_bounds = array<i64: 2, 1>, scalar_prefetch = 0 : i64, scratch_operands = 0 : i64, tpu.core_type = #tpu.core_type<tc>, window_params = [{transform_indices = @transform_0, window_bounds = array<i64: 2>}, {transform_indices = @transform_1, window_bounds = array<i64: 1, 1, 1024>}, {transform_indices = @transform_2, window_bounds = array<i64: 1, 1, 1024>}]} {
    %0 = arith.index_cast %arg0 : i32 to index
    %1 = memref.load %arg2[%0] : memref<2xf32, #tpu.memory_space<smem>>
    %c0 = arith.constant 0 : index
    %c0_0 = arith.constant 0 : index
    %c0_1 = arith.constant 0 : index
    %2 = vector.load %arg3[%c0, %c0_0, %c0_1] : memref<1x1x1024xf32, #tpu.memory_space<vmem>>, vector<1x1x1024xf32>
    %3 = vector.broadcast %1 : f32 to vector<1x1x1024xf32>
    %4 = arith.mulf %2, %3 : vector<1x1x1024xf32>
    %c0_2 = arith.constant 0 : index
    %c0_3 = arith.constant 0 : index
    %c0_4 = arith.constant 0 : index
    %5 = vector.load %arg4[%c0_2, %c0_3, %c0_4] : memref<1x1x1024xf32, #tpu.memory_space<vmem>>, vector<1x1x1024xf32>
    tpu.vector_store %arg4[%c0_2, %c0_3, %c0_4], %4 {strides = array<i32>} : memref<1x1x1024xf32, #tpu.memory_space<vmem>>, vector<1x1x1024xf32>,
    return
  }
  func.func @transform_0(%arg0: i32, %arg1: i32) -> i32 {
    %c0_i32 = arith.constant 0 : i32
    %c0_i32_0 = arith.constant 0 : i32
    return %c0_i32 : i32
  }
  func.func @transform_1(%arg0: i32, %arg1: i32) -> (i32, i32, i32) {
    %c0_i32 = arith.constant 0 : i32
    %c0_i32_0 = arith.constant 0 : i32
    return %arg0, %arg1, %c0_i32 : i32, i32, i32
  }
  func.func @transform_2(%arg0: i32, %arg1: i32) -> (i32, i32, i32) {
    %c0_i32 = arith.constant 0 : i32
    %c0_i32_0 = arith.constant 0 : i32
    return %arg0, %arg1, %c0_i32 : i32, i32, i32
  }
}

</mosaic_0001>

<llo_original>
// kernel: tpu_custom_call.1
$region0: #{tpu_custom_call.1}
  #allocation0 [shape = 'u32[]', space=smem, size = 0x4, offset = 0x4, fixed_abs, tag = 'smem constant byte address 0x4 - core index']
  #allocation1 [shape = 'u32[72,128]{1,0:T(1,128)}', space=vmem, size = 0x9000, scoped, tag = 'internal scratch']
  %s0 = inlined_call_operand.hbm [shape: f32[2], index: 0, kind: input, shape index: {}]
  %s1 = inlined_call_operand.hbm [shape: f32[2,1,1024], index: 1, kind: input, shape index: {}]
  %s2 = inlined_call_operand.hbm [shape: f32[2,1,1024], index: 2, kind: output, shape index: {}]
  %s3 = sld [smem:[#allocation0]]
  $region49: #{tpu_custom_call.1} parent=0
    _
  %s5 = ssub.s32 1, %s3
  %s6 = scalar_select 0, %s5, %s3
  $region1: #{tpu_custom_call.1} parent=0
    #allocation2 [shape = 'u8[512]{0}', space=smem, size = 0x200, scoped, tag = 'input window, operand 0, single buffered']
    #allocation3 [shape = 's32[2]{0}', space=sflag, size = 0x8, scoped, tag = 'scoped memory for tpu_custom_call.1']
    #allocation4 [shape = 's32[2]{0}', space=sflag, size = 0x8, scoped, tag = 'scoped memory for tpu_custom_call.1']
    #allocation5 [shape = 's32[2]{0}', space=sflag, size = 0x8, scoped, tag = 'scoped memory for tpu_custom_call.1']
    #allocation6 [shape = 'u8[8192]{0}', space=vmem, size = 0x2000, scoped, tag = 'input window, operand 1']
    #allocation7 [shape = 'u8[8192]{0}', space=vmem, size = 0x2000, scoped, tag = 'output window, operand 0']
    %7 = vsyncpa [#allocation5], 0
    %8 = vsyncpa [#allocation3], 0
    %s9 = scalar_lea.sflag [#allocation3], 1
    %10 = vsyncpa %s9, 0
    %11 = vsyncpa [#allocation4], 0
    %s12 = scalar_lea.sflag [#allocation4], 1
    %13 = vsyncpa %s12, 0
    loop: start=0, step=1, limit=4
    $region2: #{tpu_custom_call.1} parent=1 // loop_pre_header
      _
    $region3: #{tpu_custom_call.1} parent=1 // loop_header
      %s15 = sphi 0, %s19
      %p16 = scmp.ge.s32.totalorder %s15, 4
      %s22 = sphi 0, %s34
      %s23 = sphi 0, %s30
      %s24 = sphi 0, %s22
      %s25 = sphi 0, %s23
      %s26 = sphi 0, %s24
      %s27 = sphi 0, %s25
      %s35 = sphi 0, %s35
      %s37 = sphi 0, %s35
      %s38 = sphi 0, %s37
      %s52 = sphi 0, %s38
      %s60 = sphi 0, %s62
      %s63 = sphi 0, %s60
      %s64 = sphi 0, %s63
      %s80 = sphi 0, %s64
      %s88 = sphi 0, %s90
      %s91 = sphi 0, %s88
      %s92 = sphi 0, %s91
      %s108 = sphi 0, %s92
    $region4: #{tpu_custom_call.1} parent=1 // loop_header_branch
      %18 = sbr.rel (%p16) target = $region8
    $region5: #{tpu_custom_call.1} parent=1 // loop_body
      %s20 = ssub.s32 %s15, 1
      %s21 = ssub.s32 %s15, 2
      %s28 = sadd.s32 1, %s23
      %p29 = scmp.ge.s32.totalorder %s28, 1
      %s30 = scalar_select %p29, 0, %s28
      %s31 = sadd.s32 1, %s22
      %s32 = scalar_select %p29, %s31, %s22
      %p33 = scmp.ge.s32.totalorder %s32, 2
      %s34 = scalar_select %p33, 0, %s32
      %s36 = sadd.s32 %s35, 1
      %p39 = scmp.eq.s32.totalorder %s15, 1
      %p40 = scmp.ne.s32.totalorder %s35, %s37
      %p41 = scmp.eq.s32.totalorder %s15, 0
      %p42 = por %p40, %p41
      %p43 = scmp.ne.s32.totalorder %s35, %s37
      %p44 = scmp.eq.s32.totalorder %s20, 1
      %p45 = por %p43, %p44
      %p46 = scmp.ne.s32.totalorder %s37, %s38
      %p47 = scmp.eq.s32.totalorder %s20, 0
      %p48 = por %p46, %p47
      %p49 = scmp.ne.s32.totalorder %s37, %s38
      %p50 = scmp.eq.s32.totalorder %s21, 1
      %p51 = por %p49, %p50
      %p53 = scmp.ne.s32.totalorder %s38, %s52
      %p54 = scmp.eq.s32.totalorder %s21, 0
      %p55 = por %p53, %p54
      %s56 = ssub.s32 %s22, %s34
      %s57 = ssub.s32 %s23, %s30
      %s58 = sor.u32 %s56, %s57
      %p59 = scmp.eq.s32.totalorder %s58, 0
      %s61 = sadd.s32 %s60, 1
      %s62 = scalar_select %p59, %s60, %s61
      %p65 = pneg %p59
      %p66 = scmp.eq.s32.totalorder %s15, 1
      %p67 = por %p65, %p66
      %p68 = scmp.ne.s32.totalorder %s60, %s63
      %p69 = scmp.eq.s32.totalorder %s15, 0
      %p70 = por %p68, %p69
      %p71 = scmp.ne.s32.totalorder %s60, %s63
      %p72 = scmp.eq.s32.totalorder %s20, 1
      %p73 = por %p71, %p72
      %p74 = scmp.ne.s32.totalorder %s63, %s64
      %p75 = scmp.eq.s32.totalorder %s20, 0
      %p76 = por %p74, %p75
      %p77 = scmp.ne.s32.totalorder %s63, %s64
      %p78 = scmp.eq.s32.totalorder %s21, 1
      %p79 = por %p77, %p78
      %p81 = scmp.ne.s32.totalorder %s64, %s80
      %p82 = scmp.eq.s32.totalorder %s21, 0
      %p83 = por %p81, %p82
      %s84 = ssub.s32 %s22, %s34
      %s85 = ssub.s32 %s23, %s30
      %s86 = sor.u32 %s84, %s85
      %p87 = scmp.eq.s32.totalorder %s86, 0
      %s89 = sadd.s32 %s88, 1
      %s90 = scalar_select %p87, %s88, %s89
      %p93 = pneg %p87
      %p94 = scmp.eq.s32.totalorder %s15, 1
      %p95 = por %p93, %p94
      %p96 = scmp.ne.s32.totalorder %s88, %s91
      %p97 = scmp.eq.s32.totalorder %s15, 0
      %p98 = por %p96, %p97
      %p99 = scmp.ne.s32.totalorder %s88, %s91
      %p100 = scmp.eq.s32.totalorder %s20, 1
      %p101 = por %p99, %p100
      %p102 = scmp.ne.s32.totalorder %s91, %s92
      %p103 = scmp.eq.s32.totalorder %s20, 0
      %p104 = por %p102, %p103
      %p105 = scmp.ne.s32.totalorder %s91, %s92
      %p106 = scmp.eq.s32.totalorder %s21, 1
      %p107 = por %p105, %p106
      %p109 = scmp.ne.s32.totalorder %s92, %s108
      %p110 = scmp.eq.s32.totalorder %s21, 0
      %p111 = por %p109, %p110
      %p112 = scmp.le.s32.totalorder 1, %s15
      %p113 = scmp.lt.s32.totalorder %s15, 3
      %p114 = pnand %p112, %p113
      %p115 = pneg %p114
      // Predicated region
      $region9: #{tpu_custom_call.1} parent=5 // pred_check
        _
      $region10: #{tpu_custom_call.1} parent=5 // pred_check_branch
        %117 = sbr.rel (%p114) target = $region12
      $region11: #{tpu_custom_call.1} parent=5 // pred_region
        %s118 = ssub.s32 %s15, 1
        // Predicated region
        $region13: #{tpu_custom_call.1} parent=11 // pred_check
          %p119 = pneg %p48
        $region14: #{tpu_custom_call.1} parent=11 // pred_check_branch
          %121 = sbr.rel (%p119) target = $region16
        $region15: #{tpu_custom_call.1} parent=11 // pred_region
          %123 = vsyncadd [#allocation5], 0
          %s125 = sshll.u32 %s0, 4
          %s126 = int_to_ptr.hbm [resolvable:$true] %s125
          %128 = dma.hbm_to_smem %s126, 16, [#allocation2], [#allocation5]
        $region16: #{tpu_custom_call.1} parent=11 // pred_fallthru
          _
      $region12: #{tpu_custom_call.1} parent=5 // pred_fallthru
        _
      %p129 = scmp.lt.s32.totalorder %s15, 2
      // Predicated region
      $region17: #{tpu_custom_call.1} parent=5 // pred_check
        %p130 = pneg %p129
      $region18: #{tpu_custom_call.1} parent=5 // pred_check_branch
        %132 = sbr.rel (%p130) target = $region20
      $region19: #{tpu_custom_call.1} parent=5 // pred_region
        // Predicated region
        $region21: #{tpu_custom_call.1} parent=19 // pred_check
          %p133 = pneg %p70
        $region22: #{tpu_custom_call.1} parent=19 // pred_check_branch
          %135 = sbr.rel (%p133) target = $region24
        $region23: #{tpu_custom_call.1} parent=19 // pred_region
          %s136 = sand.u32 %s60, 1
          %s137 = scalar_lea.sflag [#allocation3], %s136
          %s138 = sand.u32 %s60, 1
          %s139 = smul.addr %s138, 8
          %s140 = scalar_lea.vmem [#allocation6], %s139
          %142 = vsyncadd %s137, 0
          %s143 = smul.addr %s23, 8
          %s144 = smul.addr %s22, 8
          %s145 = sadd.s32 %s143, %s144
          %s146 = scalar_lea.hbm %s1, %s145
          %s148 = sshll.u32 %s146, 4
          %s149 = int_to_ptr.hbm [resolvable:$true] %s148
          %s150 = sshll.u32 %s140, 4
          %s151 = int_to_ptr.vmem [resolvable:$true] %s150
          %153 = dma.hbm_to_vmem [thread:$0]  %s149, 128, %s151, %s137
        $region24: #{tpu_custom_call.1} parent=19 // pred_fallthru
          _
      $region20: #{tpu_custom_call.1} parent=5 // pred_fallthru
        _
      %p154 = scmp.le.s32.totalorder 1, %s15
      %p155 = scmp.lt.s32.totalorder %s15, 3
      %p156 = pnand %p154, %p155
      %p157 = pneg %p156
      // Predicated region
      $region25: #{tpu_custom_call.1} parent=5 // pred_check
        _
      $region26: #{tpu_custom_call.1} parent=5 // pred_check_branch
        %159 = sbr.rel (%p156) target = $region28
      $region27: #{tpu_custom_call.1} parent=5 // pred_region
        %s160 = ssub.s32 %s15, 1
        // Predicated region
        $region29: #{tpu_custom_call.1} parent=27 // pred_check
          %p161 = pneg %p48
        $region30: #{tpu_custom_call.1} parent=27 // pred_check_branch
          %163 = sbr.rel (%p161) target = $region32
        $region31: #{tpu_custom_call.1} parent=27 // pred_region
          %165 = dma.done [#allocation5], 16
        $region32: #{tpu_custom_call.1} parent=27 // pred_fallthru
          _
        %s166 = sand.u32 %s63, 1
        %s167 = scalar_lea.sflag [#allocation3], %s166
        %s168 = sand.u32 %s63, 1
        %s169 = smul.addr %s168, 8
        %s170 = scalar_lea.vmem [#allocation6], %s169
        // Predicated region
        $region33: #{tpu_custom_call.1} parent=27 // pred_check
          %p171 = pneg %p76
        $region34: #{tpu_custom_call.1} parent=27 // pred_check_branch
          %173 = sbr.rel (%p171) target = $region36
        $region35: #{tpu_custom_call.1} parent=27 // pred_region
          %175 = dma.done %s167, 128
        $region36: #{tpu_custom_call.1} parent=27 // pred_fallthru
          _
        %176 = sfence
        %p177 = pneg %p48
        %p178 = pneg %p45
        %s179 = sand.u32 %s63, 1
        %s180 = scalar_lea.sflag [#allocation3], %s179
        %s181 = sand.u32 %s63, 1
        %s182 = smul.addr %s181, 8
        %s183 = scalar_lea.vmem [#allocation6], %s182
        %p184 = pneg %p76
        %p185 = pneg %p73
        %p186 = pneg %p104
        %p187 = pneg %p101
        %s188 = sand.u32 %s91, 1
        %s189 = scalar_lea.sflag [#allocation4], %s188
        %s190 = sand.u32 %s91, 1
        %s191 = smul.addr %s190, 8
        %s192 = scalar_lea.vmem [#allocation7], %s191
        %s193 = sld [smem:[#allocation2 + %s24]]
        %v194 = vld [vmem:[%s170] sm:$0xff]
        %v195 = vstv %s193
        %v196 = vmul.f32 %v194, %v195
        %197 = vst [vmem:[%s192] sm:$0xff] %v196
        %s198 = sand.u32 %s91, 1
        %s199 = scalar_lea.sflag [#allocation4], %s198
        %s200 = sand.u32 %s91, 1
        %s201 = smul.addr %s200, 8
        %s202 = scalar_lea.vmem [#allocation7], %s201
        // Predicated region
        $region37: #{tpu_custom_call.1} parent=27 // pred_check
          %p203 = pneg %p101
        $region38: #{tpu_custom_call.1} parent=27 // pred_check_branch
          %205 = sbr.rel (%p203) target = $region40
        $region39: #{tpu_custom_call.1} parent=27 // pred_region
          %207 = vsyncadd %s199, 0
          %s208 = smul.addr %s25, 8
          %s209 = smul.addr %s24, 8
          %s210 = sadd.s32 %s208, %s209
          %s211 = scalar_lea.hbm %s2, %s210
          %s213 = sshll.u32 %s202, 4
          %s214 = int_to_ptr.vmem [resolvable:$true] %s213
          %s215 = sshll.u32 %s211, 4
          %s216 = int_to_ptr.hbm [resolvable:$true] %s215
          %218 = dma.vmem_to_hbm [thread:$0]  %s214, 128, %s216, %s199
        $region40: #{tpu_custom_call.1} parent=27 // pred_fallthru
          _
      $region28: #{tpu_custom_call.1} parent=5 // pred_fallthru
        _
      %p219 = scmp.le.s32.totalorder 2, %s15
      // Predicated region
      $region41: #{tpu_custom_call.1} parent=5 // pred_check
        %p220 = pneg %p219
      $region42: #{tpu_custom_call.1} parent=5 // pred_check_branch
        %222 = sbr.rel (%p220) target = $region44
      $region43: #{tpu_custom_call.1} parent=5 // pred_region
        %s223 = ssub.s32 %s15, 2
        // Predicated region
        $region45: #{tpu_custom_call.1} parent=43 // pred_check
          %p224 = pneg %p107
        $region46: #{tpu_custom_call.1} parent=43 // pred_check_branch
          %226 = sbr.rel (%p224) target = $region48
        $region47: #{tpu_custom_call.1} parent=43 // pred_region
          %s227 = sand.u32 %s92, 1
          %s228 = scalar_lea.sflag [#allocation4], %s227
          %s229 = sand.u32 %s92, 1
          %s230 = smul.addr %s229, 8
          %s231 = scalar_lea.vmem [#allocation7], %s230
          %233 = dma.done %s228, 128
        $region48: #{tpu_custom_call.1} parent=43 // pred_fallthru
          _
      $region44: #{tpu_custom_call.1} parent=5 // pred_fallthru
        _
    $region6: #{tpu_custom_call.1} parent=1 // loop_footer
      %s19 = sadd.s32 1, %s15
    $region7: #{tpu_custom_call.1} parent=1 // loop_footer_branch
      %14 = sbr.rel target = $region3
    $region8: #{tpu_custom_call.1} parent=1 // loop_exit
      _
    %234 = vsyncpa [#allocation3], 1
    %s235 = scalar_lea.sflag [#allocation3], 1
    %236 = vsyncpa %s235, 1
    %237 = vsyncpa [#allocation4], 1
    %s238 = scalar_lea.sflag [#allocation4], 1
    %239 = vsyncpa %s238, 1
    %240 = vsyncpa [#allocation5], 1
    %s241 = scalar_lea.sflag [#allocation5], 1
    %242 = vsyncpa %s241, 1

</llo_original>
